<compile_context>
chip_gen: v7x
topology: tpu7x:2x2x1
jax: 0.10.0
libtpu: 0.0.40
codegen_flags: <defaults>
</compile_context>

<pallas_src>
import functools
import math

import jax
import jax.numpy as jnp
from jax import lax
from jax.experimental import pallas as pl
from jax.experimental.pallas import tpu as pltpu

_LANE = 128  # TPU lane width; pad the fused feature axis to a multiple of this.


def _fused_feature_kernel(x_ref, w_ref, b_ref, out_ref):
    """out[Bm, F2p] = x[Bm, K] @ W_fused[K, F2p] + b[1, F2p] (f32 accumulation).

    x arrives as f32; the bf16 cast happens here on the VMEM tile (VPU work,
    hidden under the input DMA) so the wrapper never materializes a bf16 copy
    of x in HBM.
    """
    x_bf = x_ref[...].astype(jnp.bfloat16)
    acc = jnp.dot(x_bf, w_ref[...], preferred_element_type=jnp.float32)
    out_ref[...] = (acc + b_ref[...]).astype(out_ref.dtype)


def prepare_params(w_new, b_new, w_old, b_old):
    """One-time parameter prep (model-load time, NOT on the per-forward path).

    Builds the fused, lane-dense [K, F2p] bf16 weight (new | old | zero-pad
    along the feature axis, F2p = round_up(2F, 128)) and the matching [1, F2p]
    f32 bias.  Transposes / pads / casts happen here, off the jitted forward.
    """
    feat, k = w_new.shape
    f2 = 2 * feat
    f2_pad = max(_LANE, ((f2 + _LANE - 1) // _LANE) * _LANE)

    w_fused = jnp.concatenate([w_new.T, w_old.T], axis=1)          # [K, 2F] f32
    b_fused = jnp.concatenate([b_new, b_old], axis=0)              # [2F]    f32
    if f2_pad > f2:
        w_fused = jnp.pad(w_fused, ((0, 0), (0, f2_pad - f2)))
        b_fused = jnp.pad(b_fused, ((0, f2_pad - f2),))

    w_fused = w_fused.astype(jnp.bfloat16)                         # [K, F2p] bf16
    b_fused = b_fused.reshape(1, f2_pad).astype(jnp.float32)       # [1, F2p] f32
    return w_fused, b_fused


@functools.partial(jax.jit, static_argnames=("feat_dim",))
def backward_compatible_forward(x, w_fused, b_fused, *, feat_dim):
    """x: [B, C, H, W] f32; w_fused: [K, F2p] bf16; b_fused: [1, F2p] f32."""
    B = x.shape[0]
    K = math.prod(x.shape[1:])
    F2p = w_fused.shape[1]
    assert F2p >= 2 * feat_dim and F2p % _LANE == 0

    # Flatten NCHW -> [B, K] (same as torch .view(B, -1)); stays f32 — the bf16
    # cast happens inside the kernel.
    x_flat = x.reshape(B, K)

    # Batch tiling.  f32 at the boundary -> 8-row alignment suffices.  Keep at
    # least 2 grid steps when the batch allows so the "parallel" axis shards
    # across both TensorCores on v7x.  (For v5e, 128-row tiles already saturate
    # the 4x128 MXU; 256 is only needed on v6e/v7x at scaled batch sizes.)
    if B % 8 == 0:
        block_m = min(256, B)
        if block_m == B and B % 16 == 0:
            block_m = B // 2
    else:
        block_m = B  # block == full array dim -> satisfies the (8,128) rule
    grid_m = pl.cdiv(B, block_m)

    # NOTE: at these sizes the full [K, F2p] bf16 weight (~256 KiB) stays
    # VMEM-resident (single-buffered) across the grid.  For a scaled-up
    # extractor (large K), add a K grid axis ("arbitrary", last) with an f32
    # accumulator scratch, and size tiles against v7x's 64 MiB VMEM.
    fused = pl.pallas_call(
        _fused_feature_kernel,
        out_shape=jax.ShapeDtypeStruct((B, F2p), jnp.float32),
        grid=(grid_m,),
        in_specs=[
            pl.BlockSpec((block_m, K), lambda i: (i, 0)),
            # Grid-invariant operands: single-buffer them (halves weight VMEM).
            pl.BlockSpec((K, F2p), lambda i: (0, 0),
                         pipeline_mode=pl.Buffered(1)),
            pl.BlockSpec((1, F2p), lambda i: (0, 0),
                         pipeline_mode=pl.Buffered(1)),
        ],
        out_specs=pl.BlockSpec((block_m, F2p), lambda i: (i, 0)),
        compiler_params=pltpu.CompilerParams(
            dimension_semantics=("parallel",),
            vmem_limit_bytes=32 * 1024 * 1024,
        ),
        cost_estimate=pl.CostEstimate(
            flops=2 * B * K * F2p,
            transcendentals=0,
            bytes_accessed=(B * K * 4            # x (f32)
                            + K * F2p * 2        # fused weight (bf16)
                            + F2p * 4            # bias (f32)
                            + B * F2p * 4),      # output (f32)
        ),
    )(x_flat, w_fused, b_fused)

    new_feat = fused[:, :feat_dim]
    # old_model branch is frozen / .detach()'ed in the PyTorch module.
    old_feat = lax.stop_gradient(fused[:, feat_dim:2 * feat_dim])
    return new_feat, old_feat


def _reference_f32(x, w_new, b_new, w_old, b_old):
    B = x.shape[0]
    x_flat = x.reshape(B, -1)
    return x_flat @ w_new.T + b_new, x_flat @ w_old.T + b_old


if __name__ == "__main__":
    # Small shapes consistent with the module: batch=2, channels=4, spatial=16,
    # feature dim (hidden) = 32.
    B, C, H, W, FEAT = 2, 4, 16, 16, 32
    K = C * H * W

    key = jax.random.PRNGKey(0)
    kx, kwn, kbn, kwo, kbo = jax.random.split(key, 5)

    x = jax.random.normal(kx, (B, C, H, W), dtype=jnp.float32)
    # Deterministic "checkpoints" for both sub-models.
    w_new = jax.random.normal(kwn, (FEAT, K), dtype=jnp.float32) * 0.02
    b_new = jax.random.normal(kbn, (FEAT,), dtype=jnp.float32) * 0.02
    w_old = jax.random.normal(kwo, (FEAT, K), dtype=jnp.float32) * 0.02
    b_old = jax.random.normal(kbo, (FEAT,), dtype=jnp.float32) * 0.02

    # One-time fused, lane-padded parameter layout (off the per-call path).
    w_fused, b_fused = prepare_params(w_new, b_new, w_old, b_old)

    new_feat, old_feat = backward_compatible_forward(
        x, w_fused, b_fused, feat_dim=FEAT)
    jax.block_until_ready((new_feat, old_feat))

    assert new_feat.shape == (B, FEAT) and old_feat.shape == (B, FEAT)

    # Check 1: exact-path check against a bf16-emulated reference (same math
    # the kernel does: bf16 x, bf16 weight, f32 accumulate, f32 bias).
    x_bf = x.reshape(B, K).astype(jnp.bfloat16).astype(jnp.float32)
    ref_fused = x_bf @ w_fused.astype(jnp.float32) + b_fused
    assert jnp.allclose(new_feat, ref_fused[:, :FEAT], atol=1e-4, rtol=1e-4)
    assert jnp.allclose(old_feat, ref_fused[:, FEAT:2 * FEAT], atol=1e-4, rtol=1e-4)

    # Check 2: against the full-f32 PyTorch-equivalent reference; bf16 inputs
    # over K=1024 need a looser tolerance.
    ref_new, ref_old = _reference_f32(x, w_new, b_new, w_old, b_old)
    assert jnp.allclose(new_feat, ref_new, atol=5e-2, rtol=5e-2)
    assert jnp.allclose(old_feat, ref_old, atol=5e-2, rtol=5e-2)

    # TODO(synk): train()/eval() mode toggling and the trainable-parameter-count
    # __str__ are host-side bookkeeping with no kernel equivalent; freezing of
    # old_model is represented by lax.stop_gradient on the old slice.
    print("KERNEL_OK")
</pallas_src>

<mosaic_0001>
module attributes {stable_mosaic.version = 11 : i64} {
  func.func @_fused_feature_kernel(%arg0: i32, %arg1: memref<2x1024xf32, #tpu.memory_space<vmem>>, %arg2: memref<1024x128xbf16, #tpu.memory_space<vmem>>, %arg3: memref<1x128xf32, #tpu.memory_space<vmem>>, %arg4: memref<2x128xf32, #tpu.memory_space<vmem>>) attributes {dimension_semantics = [#tpu.dimension_semantics<parallel>], iteration_bounds = array<i64: 1>, scalar_prefetch = 0 : i64, scratch_operands = 0 : i64, tpu.core_type = #tpu.core_type<tc>, window_params = [{transform_indices = @transform_0, window_bounds = array<i64: 2, 1024>}, {pipeline_mode = #tpu.pipeline_mode<synchronous>, transform_indices = @transform_1, window_bounds = array<i64: 1024, 128>}, {pipeline_mode = #tpu.pipeline_mode<synchronous>, transform_indices = @transform_2, window_bounds = array<i64: 1, 128>}, {transform_indices = @transform_3, window_bounds = array<i64: 2, 128>}]} {
    %c0 = arith.constant 0 : index
    %c0_0 = arith.constant 0 : index
    %0 = vector.load %arg1[%c0, %c0_0] : memref<2x1024xf32, #tpu.memory_space<vmem>>, vector<2x1024xf32>
    %1 = arith.truncf %0 : vector<2x1024xf32> to vector<2x1024xbf16>
    %c0_1 = arith.constant 0 : index
    %c0_2 = arith.constant 0 : index
    %2 = vector.load %arg2[%c0_1, %c0_2] : memref<1024x128xbf16, #tpu.memory_space<vmem>>, vector<1024x128xbf16>
    %cst = arith.constant dense<0.000000e+00> : vector<2x128xf32>
    %3 = tpu.matmul %1, %2, %cst {dimension_numbers = #tpu.dot_dimension_numbers<[1], [0], [0], [1], [0, 0, 1, 1], [], []>} : vector<2x1024xbf16>, vector<1024x128xbf16>, vector<2x128xf32> -> vector<2x128xf32>
    %c0_3 = arith.constant 0 : index
    %c0_4 = arith.constant 0 : index
    %4 = vector.load %arg3[%c0_3, %c0_4] : memref<1x128xf32, #tpu.memory_space<vmem>>, vector<1x128xf32>
    %5 = vector.broadcast %4 : vector<1x128xf32> to vector<2x128xf32>
    %6 = arith.addf %3, %5 : vector<2x128xf32>
    %c0_5 = arith.constant 0 : index
    %c0_6 = arith.constant 0 : index
    %7 = vector.load %arg4[%c0_5, %c0_6] : memref<2x128xf32, #tpu.memory_space<vmem>>, vector<2x128xf32>
    tpu.vector_store %arg4[%c0_5, %c0_6], %6 {strides = array<i32>} : memref<2x128xf32, #tpu.memory_space<vmem>>, vector<2x128xf32>,
    return
  }
  func.func @transform_0(%arg0: i32) -> (i32, i32) {
    %c0_i32 = arith.constant 0 : i32
    %c0_i32_0 = arith.constant 0 : i32
    return %arg0, %c0_i32 : i32, i32
  }
  func.func @transform_1(%arg0: i32) -> (i32, i32) {
    %c0_i32 = arith.constant 0 : i32
    %c0_i32_0 = arith.constant 0 : i32
    %c0_i32_1 = arith.constant 0 : i32
    return %c0_i32, %c0_i32_0 : i32, i32
  }
  func.func @transform_2(%arg0: i32) -> (i32, i32) {
    %c0_i32 = arith.constant 0 : i32
    %c0_i32_0 = arith.constant 0 : i32
    %c0_i32_1 = arith.constant 0 : i32
    return %c0_i32, %c0_i32_0 : i32, i32
  }
  func.func @transform_3(%arg0: i32) -> (i32, i32) {
    %c0_i32 = arith.constant 0 : i32
    %c0_i32_0 = arith.constant 0 : i32
    return %arg0, %c0_i32 : i32, i32
  }
}

</mosaic_0001>

<llo_original>
// kernel: backward_compatible_forward.1
$region0: #{backward_compatible_forward.1}
  #allocation0 [shape = 'u32[]', space=smem, size = 0x4, offset = 0x4, fixed_abs, tag = 'smem constant byte address 0x4 - core index']
  #allocation1 [shape = 'u32[144,128]{1,0:T(1,128)}', space=vmem, size = 0x12000, scoped, tag = 'internal scratch']
  %s0 = inlined_call_operand.vmem [shape: f32[2,1024], index: 0, kind: input, shape index: {}]
  %s1 = inlined_call_operand.hbm [shape: bf16[1024,128], index: 1, kind: input, shape index: {}]
  %s2 = inlined_call_operand.vmem [shape: f32[1,128], index: 2, kind: input, shape index: {}]
  %s3 = inlined_call_operand.vmem [shape: f32[2,128], index: 3, kind: output, shape index: {}]
  %s4 = sld [smem:[#allocation0]]
  $region26: #{backward_compatible_forward.1} parent=0
    _
  %s6 = ssub.s32 1, %s4
  %s7 = scalar_select 0, %s6, %s4
  $region1: #{backward_compatible_forward.1} parent=0
    #allocation2 [shape = 'u8[262144]{0}', space=vmem, size = 0x40000, scoped, tag = 'input window, operand 1, single buffered']
    #allocation3 [shape = 's32[1]{0}', space=sflag, size = 0x4, scoped, tag = 'scoped memory for backward_compatible_forward.1']
    %8 = vsyncpa [#allocation3], 0
    // Predicated region
    $region2: #{backward_compatible_forward.1} parent=1 // pred_check
      _
    $region3: #{backward_compatible_forward.1} parent=1 // pred_check_branch
      %10 = sbr.rel (0) target = $region5
    $region4: #{backward_compatible_forward.1} parent=1 // pred_region
      _
    $region5: #{backward_compatible_forward.1} parent=1 // pred_fallthru
      _
    // Predicated region
    $region6: #{backward_compatible_forward.1} parent=1 // pred_check
      _
    $region7: #{backward_compatible_forward.1} parent=1 // pred_check_branch
      %12 = sbr.rel (0) target = $region9
    $region8: #{backward_compatible_forward.1} parent=1 // pred_region
      %s14 = ssub.s32 8192, 8192
      %15 = vsyncadd [#allocation3], %s14
      %s16 = sshll.u32 [#allocation2], 4
      %s17 = int_to_ptr.vmem [resolvable:$true] %s16
      %22 = dma.hbm_to_vmem [thread:$0]  %s1, 8192, %s17, [#allocation3], 64, 64, 4
    $region9: #{backward_compatible_forward.1} parent=1 // pred_fallthru
      _
    // Predicated region
    $region10: #{backward_compatible_forward.1} parent=1 // pred_check
      _
    $region11: #{backward_compatible_forward.1} parent=1 // pred_check_branch
      %24 = sbr.rel (0) target = $region13
    $region12: #{backward_compatible_forward.1} parent=1 // pred_region
      _
    $region13: #{backward_compatible_forward.1} parent=1 // pred_fallthru
      _
    // Predicated region
    $region14: #{backward_compatible_forward.1} parent=1 // pred_check
      _
    $region15: #{backward_compatible_forward.1} parent=1 // pred_check_branch
      %26 = sbr.rel (0) target = $region17
    $region16: #{backward_compatible_forward.1} parent=1 // pred_region
      %27 = dma.done [#allocation3], 8192
    $region17: #{backward_compatible_forward.1} parent=1 // pred_fallthru
      _
    %v29 = vld [vmem:[%s0] sm:$0xff]
    %v30 = vld [vmem:[%s0 + $0x8] sm:$0xff]
    %v33 = vcombine.high %v29, %v29
    %v35 = vunpack.c.l.s4 1983009808
    %v36 = vunpack.c.0.s8 %v35
    %v37 = vlaneseq
    %v38 = vshrl.u32 %v37, 7
    %v39 = vsub.s32 %v36, %v38
    %v40 = vrot.slane %v29, %v39
    %v42 = vunpack.c.l.s4 1983009808
    %v43 = vunpack.c.0.s8 %v42
    %v44 = vlaneseq
    %v45 = vshrl.u32 %v44, 7
    %v46 = vsub.s32 %v43, %v45
    %v47 = vrot.slane %v33, %v46
    %v48 = vcombine.high %v40, %v40
    %v49 = vcombine.high %v47, %v47
    %v50 = vcombine.high %v30, %v30
    %v52 = vunpack.c.l.s4 1983009808
    %v53 = vunpack.c.0.s8 %v52
    %v54 = vlaneseq
    %v55 = vshrl.u32 %v54, 7
    %v56 = vsub.s32 %v53, %v55
    %v57 = vrot.slane %v30, %v56
    %v59 = vunpack.c.l.s4 1983009808
    %v60 = vunpack.c.0.s8 %v59
    %v61 = vlaneseq
    %v62 = vshrl.u32 %v61, 7
    %v63 = vsub.s32 %v60, %v62
    %v64 = vrot.slane %v50, %v63
    %v65 = vcombine.high %v57, %v57
    %v66 = vcombine.high %v64, %v64
    %v75 = vpack.c.bf16 %v40, %v40
    %v76 = vpack.c.bf16 %v48, %v48
    %v77 = vpack.c.bf16 %v47, %v47
    %v78 = vpack.c.bf16 %v49, %v49
    %v79 = vpack.c.bf16 %v57, %v57
    %v80 = vpack.c.bf16 %v65, %v65
    %v81 = vpack.c.bf16 %v64, %v64
    %v82 = vpack.c.bf16 %v66, %v66
    %v83 = vld [vmem:[#allocation2] sm:$0xf]
    %v84 = vld [vmem:[#allocation2 + $0x4] sm:$0xf]
    %v85 = vld [vmem:[#allocation2 + $0x8] sm:$0xf]
    %v86 = vld [vmem:[#allocation2 + $0xc] sm:$0xf]
    %v87 = vld [vmem:[#allocation2 + $0x10] sm:$0xf]
    %v88 = vld [vmem:[#allocation2 + $0x14] sm:$0xf]
    %v89 = vld [vmem:[#allocation2 + $0x18] sm:$0xf]
    %v90 = vld [vmem:[#allocation2 + $0x1c] sm:$0xf]
    %v91 = vld [vmem:[#allocation2 + $0x20] sm:$0xf]
    %v92 = vld [vmem:[#allocation2 + $0x24] sm:$0xf]
    %v93 = vld [vmem:[#allocation2 + $0x28] sm:$0xf]
    %v94 = vld [vmem:[#allocation2 + $0x2c] sm:$0xf]
    %v95 = vld [vmem:[#allocation2 + $0x30] sm:$0xf]
    %v96 = vld [vmem:[#allocation2 + $0x34] sm:$0xf]
    %v97 = vld [vmem:[#allocation2 + $0x38] sm:$0xf]
    %v98 = vld [vmem:[#allocation2 + $0x3c] sm:$0xf]
    %v99 = vld [vmem:[#allocation2 + $0x40] sm:$0xf]
    %v100 = vld [vmem:[#allocation2 + $0x44] sm:$0xf]
    %v101 = vld [vmem:[#allocation2 + $0x48] sm:$0xf]
    %v102 = vld [vmem:[#allocation2 + $0x4c] sm:$0xf]
    %v103 = vld [vmem:[#allocation2 + $0x50] sm:$0xf]
    %v104 = vld [vmem:[#allocation2 + $0x54] sm:$0xf]
    %v105 = vld [vmem:[#allocation2 + $0x58] sm:$0xf]
    %v106 = vld [vmem:[#allocation2 + $0x5c] sm:$0xf]
    %v107 = vld [vmem:[#allocation2 + $0x60] sm:$0xf]
    %v108 = vld [vmem:[#allocation2 + $0x64] sm:$0xf]
    %v109 = vld [vmem:[#allocation2 + $0x68] sm:$0xf]
    %v110 = vld [vmem:[#allocation2 + $0x6c] sm:$0xf]
    %v111 = vld [vmem:[#allocation2 + $0x70] sm:$0xf]
    %v112 = vld [vmem:[#allocation2 + $0x74] sm:$0xf]
    %v113 = vld [vmem:[#allocation2 + $0x78] sm:$0xf]
    %v114 = vld [vmem:[#allocation2 + $0x7c] sm:$0xf]
    %v115 = vld [vmem:[#allocation2 + $0x80] sm:$0xf]
    %v116 = vld [vmem:[#allocation2 + $0x84] sm:$0xf]
    %v117 = vld [vmem:[#allocation2 + $0x88] sm:$0xf]
    %v118 = vld [vmem:[#allocation2 + $0x8c] sm:$0xf]
    %v119 = vld [vmem:[#allocation2 + $0x90] sm:$0xf]
    %v120 = vld [vmem:[#allocation2 + $0x94] sm:$0xf]
    %v121 = vld [vmem:[#allocation2 + $0x98] sm:$0xf]
    %v122 = vld [vmem:[#allocation2 + $0x9c] sm:$0xf]
    %v123 = vld [vmem:[#allocation2 + $0xa0] sm:$0xf]
    %v124 = vld [vmem:[#allocation2 + $0xa4] sm:$0xf]
    %v125 = vld [vmem:[#allocation2 + $0xa8] sm:$0xf]
    %v126 = vld [vmem:[#allocation2 + $0xac] sm:$0xf]
    %v127 = vld [vmem:[#allocation2 + $0xb0] sm:$0xf]
    %v128 = vld [vmem:[#allocation2 + $0xb4] sm:$0xf]
    %v129 = vld [vmem:[#allocation2 + $0xb8] sm:$0xf]
    %v130 = vld [vmem:[#allocation2 + $0xbc] sm:$0xf]
    %v131 = vld [vmem:[#allocation2 + $0xc0] sm:$0xf]
    %v132 = vld [vmem:[#allocation2 + $0xc4] sm:$0xf]
    %v133 = vld [vmem:[#allocation2 + $0xc8] sm:$0xf]
    %v134 = vld [vmem:[#allocation2 + $0xcc] sm:$0xf]
    %v135 = vld [vmem:[#allocation2 + $0xd0] sm:$0xf]
    %v136 = vld [vmem:[#allocation2 + $0xd4] sm:$0xf]
    %v137 = vld [vmem:[#allocation2 + $0xd8] sm:$0xf]
    %v138 = vld [vmem:[#allocation2 + $0xdc] sm:$0xf]
    %v139 = vld [vmem:[#allocation2 + $0xe0] sm:$0xf]
    %v140 = vld [vmem:[#allocation2 + $0xe4] sm:$0xf]
    %v141 = vld [vmem:[#allocation2 + $0xe8] sm:$0xf]
    %v142 = vld [vmem:[#allocation2 + $0xec] sm:$0xf]
    %v143 = vld [vmem:[#allocation2 + $0xf0] sm:$0xf]
    %v144 = vld [vmem:[#allocation2 + $0xf4] sm:$0xf]
    %v145 = vld [vmem:[#allocation2 + $0xf8] sm:$0xf]
    %v146 = vld [vmem:[#allocation2 + $0xfc] sm:$0xf]
    %v147 = vld [vmem:[#allocation2 + $0x100] sm:$0xf]
    %v148 = vld [vmem:[#allocation2 + $0x104] sm:$0xf]
    %v149 = vld [vmem:[#allocation2 + $0x108] sm:$0xf]
    %v150 = vld [vmem:[#allocation2 + $0x10c] sm:$0xf]
    %v151 = vld [vmem:[#allocation2 + $0x110] sm:$0xf]
    %v152 = vld [vmem:[#allocation2 + $0x114] sm:$0xf]
    %v153 = vld [vmem:[#allocation2 + $0x118] sm:$0xf]
    %v154 = vld [vmem:[#allocation2 + $0x11c] sm:$0xf]
    %v155 = vld [vmem:[#allocation2 + $0x120] sm:$0xf]
    %v156 = vld [vmem:[#allocation2 + $0x124] sm:$0xf]
    %v157 = vld [vmem:[#allocation2 + $0x128] sm:$0xf]
    %v158 = vld [vmem:[#allocation2 + $0x12c] sm:$0xf]
    %v159 = vld [vmem:[#allocation2 + $0x130] sm:$0xf]
    %v160 = vld [vmem:[#allocation2 + $0x134] sm:$0xf]
    %v161 = vld [vmem:[#allocation2 + $0x138] sm:$0xf]
    %v162 = vld [vmem:[#allocation2 + $0x13c] sm:$0xf]
    %v163 = vld [vmem:[#allocation2 + $0x140] sm:$0xf]
    %v164 = vld [vmem:[#allocation2 + $0x144] sm:$0xf]
    %v165 = vld [vmem:[#allocation2 + $0x148] sm:$0xf]
    %v166 = vld [vmem:[#allocation2 + $0x14c] sm:$0xf]
    %v167 = vld [vmem:[#allocation2 + $0x150] sm:$0xf]
    %v168 = vld [vmem:[#allocation2 + $0x154] sm:$0xf]
    %v169 = vld [vmem:[#allocation2 + $0x158] sm:$0xf]
    %v170 = vld [vmem:[#allocation2 + $0x15c] sm:$0xf]
    %v171 = vld [vmem:[#allocation2 + $0x160] sm:$0xf]
    %v172 = vld [vmem:[#allocation2 + $0x164] sm:$0xf]
    %v173 = vld [vmem:[#allocation2 + $0x168] sm:$0xf]
    %v174 = vld [vmem:[#allocation2 + $0x16c] sm:$0xf]
    %v175 = vld [vmem:[#allocation2 + $0x170] sm:$0xf]
    %v176 = vld [vmem:[#allocation2 + $0x174] sm:$0xf]
    %v177 = vld [vmem:[#allocation2 + $0x178] sm:$0xf]
    %v178 = vld [vmem:[#allocation2 + $0x17c] sm:$0xf]
    %v179 = vld [vmem:[#allocation2 + $0x180] sm:$0xf]
    %v180 = vld [vmem:[#allocation2 + $0x184] sm:$0xf]
    %v181 = vld [vmem:[#allocation2 + $0x188] sm:$0xf]
    %v182 = vld [vmem:[#allocation2 + $0x18c] sm:$0xf]
    %v183 = vld [vmem:[#allocation2 + $0x190] sm:$0xf]
    %v184 = vld [vmem:[#allocation2 + $0x194] sm:$0xf]
    %v185 = vld [vmem:[#allocation2 + $0x198] sm:$0xf]
    %v186 = vld [vmem:[#allocation2 + $0x19c] sm:$0xf]
    %v187 = vld [vmem:[#allocation2 + $0x1a0] sm:$0xf]
    %v188 = vld [vmem:[#allocation2 + $0x1a4] sm:$0xf]
    %v189 = vld [vmem:[#allocation2 + $0x1a8] sm:$0xf]
    %v190 = vld [vmem:[#allocation2 + $0x1ac] sm:$0xf]
    %v191 = vld [vmem:[#allocation2 + $0x1b0] sm:$0xf]
    %v192 = vld [vmem:[#allocation2 + $0x1b4] sm:$0xf]
    %v193 = vld [vmem:[#allocation2 + $0x1b8] sm:$0xf]
    %v194 = vld [vmem:[#allocation2 + $0x1bc] sm:$0xf]
    %v195 = vld [vmem:[#allocation2 + $0x1c0] sm:$0xf]
    %v196 = vld [vmem:[#allocation2 + $0x1c4] sm:$0xf]
    %v197 = vld [vmem:[#allocation2 + $0x1c8] sm:$0xf]
    %v198 = vld [vmem:[#allocation2 + $0x1cc] sm:$0xf]
    %v199 = vld [vmem:[#allocation2 + $0x1d0] sm:$0xf]
    %v200 = vld [vmem:[#allocation2 + $0x1d4] sm:$0xf]
    %v201 = vld [vmem:[#allocation2 + $0x1d8] sm:$0xf]
    %v202 = vld [vmem:[#allocation2 + $0x1dc] sm:$0xf]
    %v203 = vld [vmem:[#allocation2 + $0x1e0] sm:$0xf]
    %v204 = vld [vmem:[#allocation2 + $0x1e4] sm:$0xf]
    %v205 = vld [vmem:[#allocation2 + $0x1e8] sm:$0xf]
    %v206 = vld [vmem:[#allocation2 + $0x1ec] sm:$0xf]
    %v207 = vld [vmem:[#allocation2 + $0x1f0] sm:$0xf]
    %v208 = vld [vmem:[#allocation2 + $0x1f4] sm:$0xf]
    %v209 = vld [vmem:[#allocation2 + $0x1f8] sm:$0xf]
    %v210 = vld [vmem:[#allocation2 + $0x1fc] sm:$0xf]
    %v211 = vld [vmem:[%s2] sm:$0x1]
    %v213 = vlaneseq
    %v214 = vshrl.u32 %v213, 7
    %v215 = vsub.s32 0, %v214
    %v216 = vrot.slane %v211, %v215
    %v346 = vunpack.c.l.b16 %v83
    %v347 = vunpack.c.l.b16 %v84
    %v348 = vunpack.c.l.b16 %v85
    %v349 = vunpack.c.l.b16 %v86
    %v350 = vunpack.c.l.b16 %v87
    %v351 = vunpack.c.l.b16 %v88
    %v352 = vunpack.c.l.b16 %v89
    %v353 = vunpack.c.l.b16 %v90
    %v354 = vunpack.c.l.b16 %v91
    %v355 = vunpack.c.l.b16 %v92
    %v356 = vunpack.c.l.b16 %v93
    %v357 = vunpack.c.l.b16 %v94
    %v358 = vunpack.c.l.b16 %v95
    %v359 = vunpack.c.l.b16 %v96
    %v360 = vunpack.c.l.b16 %v97
    %v361 = vunpack.c.l.b16 %v98
    %v362 = vunpack.c.l.b16 %v99
    %v363 = vunpack.c.l.b16 %v100
    %v364 = vunpack.c.l.b16 %v101
    %v365 = vunpack.c.l.b16 %v102
    %v366 = vunpack.c.l.b16 %v103
    %v367 = vunpack.c.l.b16 %v104
    %v368 = vunpack.c.l.b16 %v105
    %v369 = vunpack.c.l.b16 %v106
    %v370 = vunpack.c.l.b16 %v107
    %v371 = vunpack.c.l.b16 %v108
    %v372 = vunpack.c.l.b16 %v109
    %v373 = vunpack.c.l.b16 %v110
    %v374 = vunpack.c.l.b16 %v111
    %v375 = vunpack.c.l.b16 %v112
    %v376 = vunpack.c.l.b16 %v113
    %v377 = vunpack.c.l.b16 %v114
    %v378 = vunpack.c.l.b16 %v115
    %v379 = vunpack.c.l.b16 %v116
    %v380 = vunpack.c.l.b16 %v117
    %v381 = vunpack.c.l.b16 %v118
    %v382 = vunpack.c.l.b16 %v119
    %v383 = vunpack.c.l.b16 %v120
    %v384 = vunpack.c.l.b16 %v121
    %v385 = vunpack.c.l.b16 %v122
    %v386 = vunpack.c.l.b16 %v123
    %v387 = vunpack.c.l.b16 %v124
    %v388 = vunpack.c.l.b16 %v125
    %v389 = vunpack.c.l.b16 %v126
    %v390 = vunpack.c.l.b16 %v127
    %v391 = vunpack.c.l.b16 %v128
    %v392 = vunpack.c.l.b16 %v129
    %v393 = vunpack.c.l.b16 %v130
    %v394 = vunpack.c.l.b16 %v131
    %v395 = vunpack.c.l.b16 %v132
    %v396 = vunpack.c.l.b16 %v133
    %v397 = vunpack.c.l.b16 %v134
    %v398 = vunpack.c.l.b16 %v135
    %v399 = vunpack.c.l.b16 %v136
    %v400 = vunpack.c.l.b16 %v137
    %v401 = vunpack.c.l.b16 %v138
    %v402 = vunpack.c.l.b16 %v139
    %v403 = vunpack.c.l.b16 %v140
    %v404 = vunpack.c.l.b16 %v141
    %v405 = vunpack.c.l.b16 %v142
    %v406 = vunpack.c.l.b16 %v143
    %v407 = vunpack.c.l.b16 %v144
    %v408 = vunpack.c.l.b16 %v145
    %v409 = vunpack.c.l.b16 %v146
    %v410 = vunpack.c.l.b16 %v147
    %v411 = vunpack.c.l.b16 %v148
    %v412 = vunpack.c.l.b16 %v149
    %v413 = vunpack.c.l.b16 %v150
    %v414 = vunpack.c.l.b16 %v151
    %v415 = vunpack.c.l.b16 %v152
    %v416 = vunpack.c.l.b16 %v153
    %v417 = vunpack.c.l.b16 %v154
    %v418 = vunpack.c.l.b16 %v155
    %v419 = vunpack.c.l.b16 %v156
    %v420 = vunpack.c.l.b16 %v157
    %v421 = vunpack.c.l.b16 %v158
    %v422 = vunpack.c.l.b16 %v159
    %v423 = vunpack.c.l.b16 %v160
    %v424 = vunpack.c.l.b16 %v161
    %v425 = vunpack.c.l.b16 %v162
    %v426 = vunpack.c.l.b16 %v163
    %v427 = vunpack.c.l.b16 %v164
    %v428 = vunpack.c.l.b16 %v165
    %v429 = vunpack.c.l.b16 %v166
    %v430 = vunpack.c.l.b16 %v167
    %v431 = vunpack.c.l.b16 %v168
    %v432 = vunpack.c.l.b16 %v169
    %v433 = vunpack.c.l.b16 %v170
    %v434 = vunpack.c.l.b16 %v171
    %v435 = vunpack.c.l.b16 %v172
    %v436 = vunpack.c.l.b16 %v173
    %v437 = vunpack.c.l.b16 %v174
    %v438 = vunpack.c.l.b16 %v175
    %v439 = vunpack.c.l.b16 %v176
    %v440 = vunpack.c.l.b16 %v177
    %v441 = vunpack.c.l.b16 %v178
    %v442 = vunpack.c.l.b16 %v179
    %v443 = vunpack.c.l.b16 %v180
    %v444 = vunpack.c.l.b16 %v181
    %v445 = vunpack.c.l.b16 %v182
    %v446 = vunpack.c.l.b16 %v183
    %v447 = vunpack.c.l.b16 %v184
    %v448 = vunpack.c.l.b16 %v185
    %v449 = vunpack.c.l.b16 %v186
    %v450 = vunpack.c.l.b16 %v187
    %v451 = vunpack.c.l.b16 %v188
    %v452 = vunpack.c.l.b16 %v189
    %v453 = vunpack.c.l.b16 %v190
    %v454 = vunpack.c.l.b16 %v191
    %v455 = vunpack.c.l.b16 %v192
    %v456 = vunpack.c.l.b16 %v193
    %v457 = vunpack.c.l.b16 %v194
    %v458 = vunpack.c.l.b16 %v195
    %v459 = vunpack.c.l.b16 %v196
    %v460 = vunpack.c.l.b16 %v197
    %v461 = vunpack.c.l.b16 %v198
    %v462 = vunpack.c.l.b16 %v199
    %v463 = vunpack.c.l.b16 %v200
    %v464 = vunpack.c.l.b16 %v201
    %v465 = vunpack.c.l.b16 %v202
    %v466 = vunpack.c.l.b16 %v203
    %v467 = vunpack.c.l.b16 %v204
    %v468 = vunpack.c.l.b16 %v205
    %v469 = vunpack.c.l.b16 %v206
    %v470 = vunpack.c.l.b16 %v207
    %v471 = vunpack.c.l.b16 %v208
    %v472 = vunpack.c.l.b16 %v209
    %v473 = vunpack.c.l.b16 %v210
    %v474 = vpack.c.b16 %v347, %v346
    %v475 = vpack.c.b16 %v349, %v348
    %v476 = vpack.c.b16 %v351, %v350
    %v477 = vpack.c.b16 %v353, %v352
    %v478 = vpack.c.b16 %v355, %v354
    %v479 = vpack.c.b16 %v357, %v356
    %v480 = vpack.c.b16 %v359, %v358
    %v481 = vpack.c.b16 %v361, %v360
    %v482 = vpack.c.b16 %v363, %v362
    %v483 = vpack.c.b16 %v365, %v364
    %v484 = vpack.c.b16 %v367, %v366
    %v485 = vpack.c.b16 %v369, %v368
    %v486 = vpack.c.b16 %v371, %v370
    %v487 = vpack.c.b16 %v373, %v372
    %v488 = vpack.c.b16 %v375, %v374
    %v489 = vpack.c.b16 %v377, %v376
    %v490 = vpack.c.b16 %v379, %v378
    %v491 = vpack.c.b16 %v381, %v380
    %v492 = vpack.c.b16 %v383, %v382
    %v493 = vpack.c.b16 %v385, %v384
    %v494 = vpack.c.b16 %v387, %v386
    %v495 = vpack.c.b16 %v389, %v388
    %v496 = vpack.c.b16 %v391, %v390
    %v497 = vpack.c.b16 %v393, %v392
    %v498 = vpack.c.b16 %v395, %v394
    %v499 = vpack.c.b16 %v397, %v396
    %v500 = vpack.c.b16 %v399, %v398
    %v501 = vpack.c.b16 %v401, %v400
    %v502 = vpack.c.b16 %v403, %v402
    %v503 = vpack.c.b16 %v405, %v404
    %v504 = vpack.c.b16 %v407, %v406
    %v505 = vpack.c.b16 %v409, %v408
    %v506 = vpack.c.b16 %v411, %v410
    %v507 = vpack.c.b16 %v413, %v412
    %v508 = vpack.c.b16 %v415, %v414
    %v509 = vpack.c.b16 %v417, %v416
    %v510 = vpack.c.b16 %v419, %v418
    %v511 = vpack.c.b16 %v421, %v420
    %v512 = vpack.c.b16 %v423, %v422
    %v513 = vpack.c.b16 %v425, %v424
    %v514 = vpack.c.b16 %v427, %v426
    %v515 = vpack.c.b16 %v429, %v428
    %v516 = vpack.c.b16 %v431, %v430
    %v517 = vpack.c.b16 %v433, %v432
    %v518 = vpack.c.b16 %v435, %v434
    %v519 = vpack.c.b16 %v437, %v436
    %v520 = vpack.c.b16 %v439, %v438
    %v521 = vpack.c.b16 %v441, %v440
    %v522 = vpack.c.b16 %v443, %v442
    %v523 = vpack.c.b16 %v445, %v444
    %v524 = vpack.c.b16 %v447, %v446
    %v525 = vpack.c.b16 %v449, %v448
    %v526 = vpack.c.b16 %v451, %v450
    %v527 = vpack.c.b16 %v453, %v452
    %v528 = vpack.c.b16 %v455, %v454
    %v529 = vpack.c.b16 %v457, %v456
    %v530 = vpack.c.b16 %v459, %v458
    %v531 = vpack.c.b16 %v461, %v460
    %v532 = vpack.c.b16 %v463, %v462
    %v533 = vpack.c.b16 %v465, %v464
    %v534 = vpack.c.b16 %v467, %v466
    %v535 = vpack.c.b16 %v469, %v468
    %v536 = vpack.c.b16 %v471, %v470
    %v537 = vpack.c.b16 %v473, %v472
    %602 = vmatprep.subr.bf16.mxu0 0
    %603 = vmatpush1.bf16.msra.mxu0 %v474
    %604 = vmatprep.subr.bf16.mxu0 0
    %605 = vmatpush1.bf16.msra.mxu0 %v475
    %606 = vmatprep.subr.bf16.mxu0 0
    %607 = vmatpush1.bf16.msra.mxu0 %v476
    %608 = vmatprep.subr.bf16.mxu0 0
    %609 = vmatpush1.bf16.msra.mxu0 %v477
    %610 = vmatprep.subr.bf16.mxu0 0
    %611 = vmatpush1.bf16.msra.mxu0 %v478
    %612 = vmatprep.subr.bf16.mxu0 0
    %613 = vmatpush1.bf16.msra.mxu0 %v479
    %614 = vmatprep.subr.bf16.mxu0 0
    %615 = vmatpush1.bf16.msra.mxu0 %v480
    %616 = vmatprep.subr.bf16.mxu0 0
    %617 = vmatpush1.bf16.msra.mxu0 %v481
    %618 = vmatprep.subr.bf16.mxu0 0
    %619 = vmatpush1.bf16.msra.mxu0 %v482
    %620 = vmatprep.subr.bf16.mxu0 0
    %621 = vmatpush1.bf16.msra.mxu0 %v483
    %622 = vmatprep.subr.bf16.mxu0 0
    %623 = vmatpush1.bf16.msra.mxu0 %v484
    %624 = vmatprep.subr.bf16.mxu0 0
    %625 = vmatpush1.bf16.msra.mxu0 %v485
    %626 = vmatprep.subr.bf16.mxu0 0
    %627 = vmatpush1.bf16.msra.mxu0 %v486
    %628 = vmatprep.subr.bf16.mxu0 0
    %629 = vmatpush1.bf16.msra.mxu0 %v487
    %630 = vmatprep.subr.bf16.mxu0 0
    %631 = vmatpush1.bf16.msra.mxu0 %v488
    %632 = vmatprep.subr.bf16.mxu0 0
    %633 = vmatpush1.bf16.msra.mxu0 %v489
    %634 = vmatprep.mubr.bf16.mxu0 %v76
    %635 = vmatmul.mubr.bf16.gmra.mrb[0].mxu0 %v75
    %v636 = vpop.f32.mrb[0].mxu0
    %v637 = vadd.f32 %v216, %v636
    %v638 = vpop.f32.mrb[0].mxu0
    %v639 = vpop.f32.mrb[0].mxu0
    %v640 = vpop.f32.mrb[0].mxu0
    %641 = vdwg.mxu0
    %642 = vmatprep.subr.bf16.mxu0 0
    %643 = vmatpush1.bf16.msra.mxu0 %v490
    %644 = vmatprep.subr.bf16.mxu0 0
    %645 = vmatpush1.bf16.msra.mxu0 %v491
    %646 = vmatprep.subr.bf16.mxu0 0
    %647 = vmatpush1.bf16.msra.mxu0 %v492
    %648 = vmatprep.subr.bf16.mxu0 0
    %649 = vmatpush1.bf16.msra.mxu0 %v493
    %650 = vmatprep.subr.bf16.mxu0 0
    %651 = vmatpush1.bf16.msra.mxu0 %v494
    %652 = vmatprep.subr.bf16.mxu0 0
    %653 = vmatpush1.bf16.msra.mxu0 %v495
    %654 = vmatprep.subr.bf16.mxu0 0
    %655 = vmatpush1.bf16.msra.mxu0 %v496
    %656 = vmatprep.subr.bf16.mxu0 0
    %657 = vmatpush1.bf16.msra.mxu0 %v497
    %658 = vmatprep.subr.bf16.mxu0 0
    %659 = vmatpush1.bf16.msra.mxu0 %v498
    %660 = vmatprep.subr.bf16.mxu0 0
    %661 = vmatpush1.bf16.msra.mxu0 %v499
    %662 = vmatprep.subr.bf16.mxu0 0
    %663 = vmatpush1.bf16.msra.mxu0 %v500
    %664 = vmatprep.subr.bf16.mxu0 0
    %665 = vmatpush1.bf16.msra.mxu0 %v501
    %666 = vmatprep.subr.bf16.mxu0 0
    %667 = vmatpush1.bf16.msra.mxu0 %v502
    %668 = vmatprep.subr.bf16.mxu0 0
    %669 = vmatpush1.bf16.msra.mxu0 %v503
    %670 = vmatprep.subr.bf16.mxu0 0
    %671 = vmatpush1.bf16.msra.mxu0 %v504
    %672 = vmatprep.subr.bf16.mxu0 0
    %673 = vmatpush1.bf16.msra.mxu0 %v505
    %674 = vmatprep.mubr.bf16.mxu0 %v78
    %675 = vmatmul.mubr.bf16.gmra.mrb[0].mxu0 %v77
    %v676 = vpop.f32.mrb[0].mxu0
    %v677 = vadd.f32 %v637, %v676
    %v678 = vpop.f32.mrb[0].mxu0
    %v679 = vpop.f32.mrb[0].mxu0
    %v680 = vpop.f32.mrb[0].mxu0
    %681 = vdwg.mxu0
    %682 = vmatprep.subr.bf16.mxu0 0
    %683 = vmatpush1.bf16.msra.mxu0 %v506
    %684 = vmatprep.subr.bf16.mxu0 0
    %685 = vmatpush1.bf16.msra.mxu0 %v507
    %686 = vmatprep.subr.bf16.mxu0 0
    %687 = vmatpush1.bf16.msra.mxu0 %v508
    %688 = vmatprep.subr.bf16.mxu0 0
    %689 = vmatpush1.bf16.msra.mxu0 %v509
    %690 = vmatprep.subr.bf16.mxu0 0
    %691 = vmatpush1.bf16.msra.mxu0 %v510
    %692 = vmatprep.subr.bf16.mxu0 0
    %693 = vmatpush1.bf16.msra.mxu0 %v511
    %694 = vmatprep.subr.bf16.mxu0 0
    %695 = vmatpush1.bf16.msra.mxu0 %v512
    %696 = vmatprep.subr.bf16.mxu0 0
    %697 = vmatpush1.bf16.msra.mxu0 %v513
    %698 = vmatprep.subr.bf16.mxu0 0
    %699 = vmatpush1.bf16.msra.mxu0 %v514
    %700 = vmatprep.subr.bf16.mxu0 0
    %701 = vmatpush1.bf16.msra.mxu0 %v515
    %702 = vmatprep.subr.bf16.mxu0 0
    %703 = vmatpush1.bf16.msra.mxu0 %v516
    %704 = vmatprep.subr.bf16.mxu0 0
    %705 = vmatpush1.bf16.msra.mxu0 %v517
    %706 = vmatprep.subr.bf16.mxu0 0
    %707 = vmatpush1.bf16.msra.mxu0 %v518
    %708 = vmatprep.subr.bf16.mxu0 0
    %709 = vmatpush1.bf16.msra.mxu0 %v519
    %710 = vmatprep.subr.bf16.mxu0 0
    %711 = vmatpush1.bf16.msra.mxu0 %v520
    %712 = vmatprep.subr.bf16.mxu0 0
    %713 = vmatpush1.bf16.msra.mxu0 %v521
    %714 = vmatprep.mubr.bf16.mxu0 %v80
    %715 = vmatmul.mubr.bf16.gmra.mrb[0].mxu0 %v79
    %v716 = vpop.f32.mrb[0].mxu0
    %v717 = vadd.f32 %v677, %v716
    %v718 = vpop.f32.mrb[0].mxu0
    %v719 = vpop.f32.mrb[0].mxu0
    %v720 = vpop.f32.mrb[0].mxu0
    %721 = vdwg.mxu0
    %722 = vmatprep.subr.bf16.mxu0 0
    %723 = vmatpush1.bf16.msra.mxu0 %v522
    %724 = vmatprep.subr.bf16.mxu0 0
    %725 = vmatpush1.bf16.msra.mxu0 %v523
    %726 = vmatprep.subr.bf16.mxu0 0
    %727 = vmatpush1.bf16.msra.mxu0 %v524
    %728 = vmatprep.subr.bf16.mxu0 0
    %729 = vmatpush1.bf16.msra.mxu0 %v525
    %730 = vmatprep.subr.bf16.mxu0 0
    %731 = vmatpush1.bf16.msra.mxu0 %v526
    %732 = vmatprep.subr.bf16.mxu0 0
    %733 = vmatpush1.bf16.msra.mxu0 %v527
    %734 = vmatprep.subr.bf16.mxu0 0
    %735 = vmatpush1.bf16.msra.mxu0 %v528
    %736 = vmatprep.subr.bf16.mxu0 0
    %737 = vmatpush1.bf16.msra.mxu0 %v529
    %738 = vmatprep.subr.bf16.mxu0 0
    %739 = vmatpush1.bf16.msra.mxu0 %v530
    %740 = vmatprep.subr.bf16.mxu0 0
    %741 = vmatpush1.bf16.msra.mxu0 %v531
    %742 = vmatprep.subr.bf16.mxu0 0
    %743 = vmatpush1.bf16.msra.mxu0 %v532
    %744 = vmatprep.subr.bf16.mxu0 0
    %745 = vmatpush1.bf16.msra.mxu0 %v533
    %746 = vmatprep.subr.bf16.mxu0 0
    %747 = vmatpush1.bf16.msra.mxu0 %v534
    %748 = vmatprep.subr.bf16.mxu0 0
    %749 = vmatpush1.bf16.msra.mxu0 %v535
    %750 = vmatprep.subr.bf16.mxu0 0
    %751 = vmatpush1.bf16.msra.mxu0 %v536
    %752 = vmatprep.subr.bf16.mxu0 0
    %753 = vmatpush1.bf16.msra.mxu0 %v537
    %754 = vmatprep.mubr.bf16.mxu0 %v82
    %755 = vmatmul.mubr.bf16.gmra.mrb[0].mxu0 %v81
    %v756 = vpop.f32.mrb[0].mxu0
    %v757 = vadd.f32 %v717, %v756
    %v758 = vpop.f32.mrb[0].mxu0
    %v759 = vpop.f32.mrb[0].mxu0
    %v760 = vpop.f32.mrb[0].mxu0
    %761 = vdwg.mxu0
    %762 = vst [vmem:[%s3] sm:$0x3] %v757
    // Predicated region
    $region18: #{backward_compatible_forward.1} parent=1 // pred_check
      _
    $region19: #{backward_compatible_forward.1} parent=1 // pred_check_branch
      %764 = sbr.rel (0) target = $region21
    $region20: #{backward_compatible_forward.1} parent=1 // pred_region
      _
    $region21: #{backward_compatible_forward.1} parent=1 // pred_fallthru
      _
    // Predicated region
    $region22: #{backward_compatible_forward.1} parent=1 // pred_check
      _
    $region23: #{backward_compatible_forward.1} parent=1 // pred_check_branch
      %766 = sbr.rel (0) target = $region25
    $region24: #{backward_compatible_forward.1} parent=1 // pred_region
      _
    $region25: #{backward_compatible_forward.1} parent=1 // pred_fallthru
      _
    %767 = vsyncpa [#allocation3], 1

</llo_original>
